<compile_context>
chip_gen: v7x
topology: tpu7x:2x2x1
jax: 0.10.0
libtpu: 0.0.40
codegen_flags: <defaults>
</compile_context>

<pallas_src>
import jax
import jax.numpy as jnp
from jax.experimental import pallas as pl
from jax.experimental.pallas import tpu as pltpu


def cross_attention_kernel(q_ref, kv_ref, wq_ref, bq_ref, wkv_ref, bkv_ref, o_ref):
    bt, s, d = q_ref.shape  # static block shape

    # Flatten (bt, s, d) -> (bt*s, d): the projections become plain 2-D matmuls
    # with taller LHS operands (better MXU occupancy).
    q2 = q_ref[...].reshape(bt * s, d)
    kv2 = kv_ref[...].reshape(bt * s, d)

    # Projections: y = x @ W + b (weights pre-transposed in the wrapper).
    # f32 accumulation, bias-add in f32.
    q_proj = jnp.dot(q2, wq_ref[...], preferred_element_type=jnp.float32) + bq_ref[...]
    kv_proj = jnp.dot(kv2, wkv_ref[...], preferred_element_type=jnp.float32) + bkv_ref[...]

    # Split the fused K|V projection and cast MXU operands to bf16.
    qb = q_proj.reshape(bt, s, d).astype(jnp.bfloat16)
    kb = kv_proj[:, :d].reshape(bt, s, d).astype(jnp.bfloat16)
    vb = kv_proj[:, d:].reshape(bt, s, d).astype(jnp.bfloat16)

    # Attention scores (unscaled, like the torch module): contract last dims
    # directly — no materialized transpose. f32 accumulation.
    scores = jnp.einsum('bqd,bkd->bqk', qb, kb, preferred_element_type=jnp.float32)

    # Numerically-stable softmax in f32; reciprocal goes to the EUP slot.
    m = jnp.max(scores, axis=-1, keepdims=True)
    p = jnp.exp(scores - m)
    denom = jnp.sum(p, axis=-1, keepdims=True)
    attn = p * pl.reciprocal(denom, approx=True)

    # Context: (bt, s, d) with bf16 operands, f32 accumulation.
    out = jnp.einsum('bqk,bkd->bqd', attn.astype(jnp.bfloat16), vb,
                     preferred_element_type=jnp.float32)

    # Fold the per-step batch into the lane axis -> one lane-dense (s, bt*d)
    # store instead of bt masked d-wide stores.
    out_ld = jnp.concatenate([out[i] for i in range(bt)], axis=-1)
    o_ref[0] = out_ld.astype(o_ref.dtype)


def _pick_block_b(batch, d):
    """Largest divisor of `batch` such that block_b * d <= 128 lanes."""
    if d >= 128:
        return 1
    target = max(1, 128 // d)
    best = 1
    for cand in range(1, min(batch, target) + 1):
        if batch % cand == 0:
            best = cand
    return best


def cross_attention(x, wq, bq, wk, bk, wv, bv, *, block_b=None):
    """x: (2, B, S, D) float32. Weights wq/wk/wv: (D, D) pre-transposed
    (i.e. y = x @ w + b). Biases: (1, D). Returns (B, S, D)."""
    _, B, S, D = x.shape
    q = x[0]    # (B, S, D) query source
    kv = x[1]   # (B, S, D) key/value source

    if block_b is None:
        block_b = _pick_block_b(B, D)
    assert B % block_b == 0, "block_b must divide batch"
    G = B // block_b

    # Fuse K and V projections: one (D, 2D) weight, one (1, 2D) bias.
    wkv = jnp.concatenate([wk, wv], axis=1)
    bkv = jnp.concatenate([bk, bv], axis=1)

    seq_spec = pl.BlockSpec((block_b, S, D), lambda g: (g, 0, 0))
    wq_spec = pl.BlockSpec((D, D), lambda g: (0, 0))
    bq_spec = pl.BlockSpec((1, D), lambda g: (0, 0))
    wkv_spec = pl.BlockSpec((D, 2 * D), lambda g: (0, 0))
    bkv_spec = pl.BlockSpec((1, 2 * D), lambda g: (0, 0))
    # Lane-dense output: per-step batch folded into the lane axis.
    out_spec = pl.BlockSpec((1, S, block_b * D), lambda g: (g, 0, 0))

    out_ld = pl.pallas_call(
        cross_attention_kernel,
        out_shape=jax.ShapeDtypeStruct((G, S, block_b * D), x.dtype),
        grid_spec=pltpu.PrefetchScalarGridSpec(
            num_scalar_prefetch=0,
            grid=(G,),
            in_specs=[seq_spec, seq_spec,
                      wq_spec, bq_spec,
                      wkv_spec, bkv_spec],
            out_specs=out_spec,
        ),
        compiler_params=pltpu.CompilerParams(
            dimension_semantics=("parallel",)),
    )(q, kv, wq, bq, wkv, bkv)

    # Unfold the lane-packed batch back to (B, S, D) (layout plumbing in XLA).
    out = out_ld.reshape(G, S, block_b, D).transpose(0, 2, 1, 3).reshape(B, S, D)
    return out


def _torch_linear_init(key, in_features, out_features):
    """Deterministic init mimicking nn.Linear default (uniform +-1/sqrt(in))."""
    kw, kb = jax.random.split(key)
    bound = 1.0 / jnp.sqrt(jnp.float32(in_features))
    # PyTorch stores W as (out, in); we return it pre-transposed (in, out).
    w = jax.random.uniform(kw, (in_features, out_features), jnp.float32,
                           minval=-bound, maxval=bound)
    b = jax.random.uniform(kb, (1, out_features), jnp.float32,
                           minval=-bound, maxval=bound)
    return w, b


def reference(x, wq, bq, wk, bk, wv, bv):
    q, k = x[0], x[1]
    qp = q @ wq + bq
    kp = k @ wk + bk
    vp = k @ wv + bv
    s = jnp.einsum('bqd,bkd->bqk', qp, kp)
    a = jax.nn.softmax(s, axis=-1)
    return jnp.einsum('bqk,bkd->bqd', a, vp)


if __name__ == "__main__":
    B, S, D = 8, 8, 32
    key = jax.random.PRNGKey(0)
    kx, kq, kk, kv = jax.random.split(key, 4)

    # x packs (query_source, keyvalue_source) along axis 0, like the torch
    # forward's x[0]/x[1].
    x = jax.random.normal(kx, (2, B, S, D), jnp.float32)

    wq, bq = _torch_linear_init(kq, D, D)
    wk, bk = _torch_linear_init(kk, D, D)
    wv, bv = _torch_linear_init(kv, D, D)

    out = cross_attention(x, wq, bq, wk, bk, wv, bv)
    out = jax.block_until_ready(out)

    ref = reference(x, wq, bq, wk, bk, wv, bv)
    assert out.shape == (B, S, D)
    # bf16 MXU operands inside the kernel -> looser tolerance vs. f32 reference.
    assert jnp.allclose(out, ref, atol=5e-2, rtol=5e-2), "mismatch vs reference"

    print("KERNEL_OK")
</pallas_src>

<mosaic_0001>
module attributes {stable_mosaic.version = 11 : i64} {
  func.func @cross_attention_kernel(%arg0: i32, %arg1: memref<4x8x32xf32, #tpu.memory_space<vmem>>, %arg2: memref<4x8x32xf32, #tpu.memory_space<vmem>>, %arg3: memref<32x32xf32, #tpu.memory_space<vmem>>, %arg4: memref<1x32xf32, #tpu.memory_space<vmem>>, %arg5: memref<32x64xf32, #tpu.memory_space<vmem>>, %arg6: memref<1x64xf32, #tpu.memory_space<vmem>>, %arg7: memref<1x8x128xf32, #tpu.memory_space<vmem>>) attributes {dimension_semantics = [#tpu.dimension_semantics<parallel>], iteration_bounds = array<i64: 2>, scalar_prefetch = 0 : i64, scratch_operands = 0 : i64, tpu.core_type = #tpu.core_type<tc>, window_params = [{transform_indices = @transform_0, window_bounds = array<i64: 4, 8, 32>}, {transform_indices = @transform_1, window_bounds = array<i64: 4, 8, 32>}, {pipeline_mode = #tpu.pipeline_mode<synchronous>, transform_indices = @transform_2, window_bounds = array<i64: 32, 32>}, {pipeline_mode = #tpu.pipeline_mode<synchronous>, transform_indices = @transform_3, window_bounds = array<i64: 1, 32>}, {pipeline_mode = #tpu.pipeline_mode<synchronous>, transform_indices = @transform_4, window_bounds = array<i64: 32, 64>}, {pipeline_mode = #tpu.pipeline_mode<synchronous>, transform_indices = @transform_5, window_bounds = array<i64: 1, 64>}, {transform_indices = @transform_6, window_bounds = array<i64: 1, 8, 128>}]} {
    %c0 = arith.constant 0 : index
    %c0_0 = arith.constant 0 : index
    %c0_1 = arith.constant 0 : index
    %0 = vector.load %arg1[%c0, %c0_0, %c0_1] : memref<4x8x32xf32, #tpu.memory_space<vmem>>, vector<4x8x32xf32>
    %1 = vector.shape_cast %0 : vector<4x8x32xf32> to vector<32x32xf32>
    %c0_2 = arith.constant 0 : index
    %c0_3 = arith.constant 0 : index
    %c0_4 = arith.constant 0 : index
    %2 = vector.load %arg2[%c0_2, %c0_3, %c0_4] : memref<4x8x32xf32, #tpu.memory_space<vmem>>, vector<4x8x32xf32>
    %3 = vector.shape_cast %2 : vector<4x8x32xf32> to vector<32x32xf32>
    %c0_5 = arith.constant 0 : index
    %c0_6 = arith.constant 0 : index
    %4 = vector.load %arg3[%c0_5, %c0_6] : memref<32x32xf32, #tpu.memory_space<vmem>>, vector<32x32xf32>
    %cst = arith.constant dense<0.000000e+00> : vector<32x32xf32>
    %5 = tpu.matmul %1, %4, %cst {dimension_numbers = #tpu.dot_dimension_numbers<[1], [0], [0], [1], [0, 0, 1, 1], [], []>} : vector<32x32xf32>, vector<32x32xf32>, vector<32x32xf32> -> vector<32x32xf32>
    %c0_7 = arith.constant 0 : index
    %c0_8 = arith.constant 0 : index
    %6 = vector.load %arg4[%c0_7, %c0_8] : memref<1x32xf32, #tpu.memory_space<vmem>>, vector<1x32xf32>
    %7 = vector.broadcast %6 : vector<1x32xf32> to vector<32x32xf32>
    %8 = arith.addf %5, %7 : vector<32x32xf32>
    %c0_9 = arith.constant 0 : index
    %c0_10 = arith.constant 0 : index
    %9 = vector.load %arg5[%c0_9, %c0_10] : memref<32x64xf32, #tpu.memory_space<vmem>>, vector<32x64xf32>
    %cst_11 = arith.constant dense<0.000000e+00> : vector<32x64xf32>
    %10 = tpu.matmul %3, %9, %cst_11 {dimension_numbers = #tpu.dot_dimension_numbers<[1], [0], [0], [1], [0, 0, 1, 1], [], []>} : vector<32x32xf32>, vector<32x64xf32>, vector<32x64xf32> -> vector<32x64xf32>
    %c0_12 = arith.constant 0 : index
    %c0_13 = arith.constant 0 : index
    %11 = vector.load %arg6[%c0_12, %c0_13] : memref<1x64xf32, #tpu.memory_space<vmem>>, vector<1x64xf32>
    %12 = vector.broadcast %11 : vector<1x64xf32> to vector<32x64xf32>
    %13 = arith.addf %10, %12 : vector<32x64xf32>
    %14 = vector.shape_cast %8 : vector<32x32xf32> to vector<4x8x32xf32>
    %15 = arith.truncf %14 : vector<4x8x32xf32> to vector<4x8x32xbf16>
    %16 = vector.extract_strided_slice %13 {offsets = [0, 0], sizes = [32, 32], strides = [1, 1]} : vector<32x64xf32> to vector<32x32xf32>
    %17 = vector.shape_cast %16 : vector<32x32xf32> to vector<4x8x32xf32>
    %18 = arith.truncf %17 : vector<4x8x32xf32> to vector<4x8x32xbf16>
    %19 = vector.extract_strided_slice %13 {offsets = [0, 32], sizes = [32, 32], strides = [1, 1]} : vector<32x64xf32> to vector<32x32xf32>
    %20 = vector.shape_cast %19 : vector<32x32xf32> to vector<4x8x32xf32>
    %21 = arith.truncf %20 : vector<4x8x32xf32> to vector<4x8x32xbf16>
    "tpu.trace_start"() <{level = 10 : i32, message = "bqd,bkd->bqk"}> : () -> ()
    %cst_14 = arith.constant dense<0.000000e+00> : vector<4x8x8xf32>
    %22 = tpu.matmul %15, %18, %cst_14 {dimension_numbers = #tpu.dot_dimension_numbers<[2], [2], [1], [1], [0, 0, 0, 1, 1, 1], [0], [0]>} : vector<4x8x32xbf16>, vector<4x8x32xbf16>, vector<4x8x8xf32> -> vector<4x8x8xf32>
    "tpu.trace_stop"() : () -> ()
    %cst_15 = arith.constant dense<0xFF800000> : vector<4x8xf32>
    %23 = vector.multi_reduction <maximumf>, %22, %cst_15 [2] : vector<4x8x8xf32> to vector<4x8xf32>
    %24 = vector.shape_cast %23 : vector<4x8xf32> to vector<4x8x1xf32>
    %25 = vector.broadcast %24 : vector<4x8x1xf32> to vector<4x8x8xf32>
    %26 = arith.subf %22, %25 : vector<4x8x8xf32>
    %27 = math.exp %26 : vector<4x8x8xf32>
    %cst_16 = arith.constant dense<0.000000e+00> : vector<4x8xf32>
    %28 = vector.multi_reduction <add>, %27, %cst_16 [2] : vector<4x8x8xf32> to vector<4x8xf32>
    %29 = vector.shape_cast %28 : vector<4x8xf32> to vector<4x8x1xf32>
    %30 = tpu.reciprocal %29 {approx = true} : vector<4x8x1xf32> -> vector<4x8x1xf32>
    %31 = vector.broadcast %30 : vector<4x8x1xf32> to vector<4x8x8xf32>
    %32 = arith.mulf %27, %31 : vector<4x8x8xf32>
    %33 = arith.truncf %32 : vector<4x8x8xf32> to vector<4x8x8xbf16>
    "tpu.trace_start"() <{level = 10 : i32, message = "bqk,bkd->bqd"}> : () -> ()
    %cst_17 = arith.constant dense<0.000000e+00> : vector<4x8x32xf32>
    %34 = tpu.matmul %33, %21, %cst_17 {dimension_numbers = #tpu.dot_dimension_numbers<[2], [1], [1], [2], [0, 0, 0, 1, 1, 2], [0], [0]>} : vector<4x8x8xbf16>, vector<4x8x32xbf16>, vector<4x8x32xf32> -> vector<4x8x32xf32>
    "tpu.trace_stop"() : () -> ()
    %35 = vector.extract_strided_slice %34 {offsets = [0, 0, 0], sizes = [1, 8, 32], strides = [1, 1, 1]} : vector<4x8x32xf32> to vector<1x8x32xf32>
    %36 = vector.shape_cast %35 : vector<1x8x32xf32> to vector<8x32xf32>
    %37 = vector.extract_strided_slice %34 {offsets = [1, 0, 0], sizes = [1, 8, 32], strides = [1, 1, 1]} : vector<4x8x32xf32> to vector<1x8x32xf32>
    %38 = vector.shape_cast %37 : vector<1x8x32xf32> to vector<8x32xf32>
    %39 = vector.extract_strided_slice %34 {offsets = [2, 0, 0], sizes = [1, 8, 32], strides = [1, 1, 1]} : vector<4x8x32xf32> to vector<1x8x32xf32>
    %40 = vector.shape_cast %39 : vector<1x8x32xf32> to vector<8x32xf32>
    %41 = vector.extract_strided_slice %34 {offsets = [3, 0, 0], sizes = [1, 8, 32], strides = [1, 1, 1]} : vector<4x8x32xf32> to vector<1x8x32xf32>
    %42 = vector.shape_cast %41 : vector<1x8x32xf32> to vector<8x32xf32>
    %43 = tpu.concatenate %36, %38, %40, %42 in 1 : vector<8x32xf32>, vector<8x32xf32>, vector<8x32xf32>, vector<8x32xf32> -> vector<8x128xf32>
    %c0_18 = arith.constant 0 : index
    %c0_19 = arith.constant 0 : index
    %c0_20 = arith.constant 0 : index
    %44 = vector.load %arg7[%c0_18, %c0_19, %c0_20] : memref<1x8x128xf32, #tpu.memory_space<vmem>>, vector<1x8x128xf32>
    %45 = vector.shape_cast %44 : vector<1x8x128xf32> to vector<8x128xf32>
    %46 = vector.shape_cast %43 : vector<8x128xf32> to vector<1x8x128xf32>
    tpu.vector_store %arg7[%c0_18, %c0_19, %c0_20], %46 {strides = array<i32>} : memref<1x8x128xf32, #tpu.memory_space<vmem>>, vector<1x8x128xf32>,
    return
  }
  func.func @transform_0(%arg0: i32) -> (i32, i32, i32) {
    %c0_i32 = arith.constant 0 : i32
    %c0_i32_0 = arith.constant 0 : i32
    %c0_i32_1 = arith.constant 0 : i32
    return %arg0, %c0_i32, %c0_i32_0 : i32, i32, i32
  }
  func.func @transform_1(%arg0: i32) -> (i32, i32, i32) {
    %c0_i32 = arith.constant 0 : i32
    %c0_i32_0 = arith.constant 0 : i32
    %c0_i32_1 = arith.constant 0 : i32
    return %arg0, %c0_i32, %c0_i32_0 : i32, i32, i32
  }
  func.func @transform_2(%arg0: i32) -> (i32, i32) {
    %c0_i32 = arith.constant 0 : i32
    %c0_i32_0 = arith.constant 0 : i32
    %c0_i32_1 = arith.constant 0 : i32
    return %c0_i32, %c0_i32_0 : i32, i32
  }
  func.func @transform_3(%arg0: i32) -> (i32, i32) {
    %c0_i32 = arith.constant 0 : i32
    %c0_i32_0 = arith.constant 0 : i32
    %c0_i32_1 = arith.constant 0 : i32
    return %c0_i32, %c0_i32_0 : i32, i32
  }
  func.func @transform_4(%arg0: i32) -> (i32, i32) {
    %c0_i32 = arith.constant 0 : i32
    %c0_i32_0 = arith.constant 0 : i32
    %c0_i32_1 = arith.constant 0 : i32
    return %c0_i32, %c0_i32_0 : i32, i32
  }
  func.func @transform_5(%arg0: i32) -> (i32, i32) {
    %c0_i32 = arith.constant 0 : i32
    %c0_i32_0 = arith.constant 0 : i32
    %c0_i32_1 = arith.constant 0 : i32
    return %c0_i32, %c0_i32_0 : i32, i32
  }
  func.func @transform_6(%arg0: i32) -> (i32, i32, i32) {
    %c0_i32 = arith.constant 0 : i32
    %c0_i32_0 = arith.constant 0 : i32
    %c0_i32_1 = arith.constant 0 : i32
    return %arg0, %c0_i32, %c0_i32_0 : i32, i32, i32
  }
}

</mosaic_0001>

<llo_original>
// kernel: tpu_custom_call.1
$region0: #{tpu_custom_call.1}
  #allocation0 [shape = 'u32[]', space=smem, size = 0x4, offset = 0x4, fixed_abs, tag = 'smem constant byte address 0x4 - core index']
  #allocation1 [shape = 'u32[144,128]{1,0:T(1,128)}', space=vmem, size = 0x12000, scoped, tag = 'internal scratch']
  %s0 = inlined_call_operand.hbm [shape: f32[8,8,32], index: 0, kind: input, shape index: {}]
  %s1 = inlined_call_operand.hbm [shape: f32[8,8,32], index: 1, kind: input, shape index: {}]
  %s2 = inlined_call_operand.hbm [shape: f32[32,32], index: 2, kind: input, shape index: {}]
  %s3 = inlined_call_operand.vmem [shape: f32[1,32], index: 3, kind: input, shape index: {}]
  %s4 = inlined_call_operand.hbm [shape: f32[32,64], index: 4, kind: input, shape index: {}]
  %s5 = inlined_call_operand.vmem [shape: f32[1,64], index: 5, kind: input, shape index: {}]
  %s6 = inlined_call_operand.hbm [shape: f32[2,8,128], index: 6, kind: output, shape index: {}]
  %s7 = sld [smem:[#allocation0]]
  $region73: #{tpu_custom_call.1} parent=0
    _
  %s9 = ssub.s32 1, %s7
  %s10 = scalar_select 0, %s9, %s7
  $region1: #{tpu_custom_call.1} parent=0
    #allocation2 [shape = 'u8[32768]{0}', space=vmem, size = 0x8000, scoped, tag = 'input window, operand 0']
    #allocation3 [shape = 's32[2]{0}', space=sflag, size = 0x8, scoped, tag = 'scoped memory for tpu_custom_call.1']
    #allocation4 [shape = 's32[2]{0}', space=sflag, size = 0x8, scoped, tag = 'scoped memory for tpu_custom_call.1']
    #allocation5 [shape = 'u8[32768]{0}', space=vmem, size = 0x8000, scoped, tag = 'input window, operand 1']
    #allocation6 [shape = 's32[2]{0}', space=sflag, size = 0x8, scoped, tag = 'scoped memory for tpu_custom_call.1']
    #allocation7 [shape = 'u8[16384]{0}', space=vmem, size = 0x4000, scoped, tag = 'input window, operand 2, single buffered']
    #allocation8 [shape = 'u8[16384]{0}', space=vmem, size = 0x4000, scoped, tag = 'input window, operand 4, single buffered']
    #allocation9 [shape = 's32[1]{0}', space=sflag, size = 0x4, scoped, tag = 'scoped memory for tpu_custom_call.1']
    #allocation10 [shape = 'u8[8192]{0}', space=vmem, size = 0x2000, scoped, tag = 'output window, operand 0']
    %11 = vsyncpa [#allocation3], 0
    %s12 = scalar_lea.sflag [#allocation3], 1
    %13 = vsyncpa %s12, 0
    %14 = vsyncpa [#allocation6], 0
    %s15 = scalar_lea.sflag [#allocation6], 1
    %16 = vsyncpa %s15, 0
    %17 = vsyncpa [#allocation9], 0
    %18 = vsyncpa [#allocation4], 0
    %s19 = scalar_lea.sflag [#allocation4], 1
    %20 = vsyncpa %s19, 0
    loop: start=0, step=1, limit=4
    $region2: #{tpu_custom_call.1} parent=1 // loop_pre_header
      _
    $region3: #{tpu_custom_call.1} parent=1 // loop_header
      %s22 = sphi 0, %s26
      %p23 = scmp.ge.s32.totalorder %s22, 4
      %s32 = sphi 0, %s34
      %s35 = sphi 0, %s32
      %s36 = sphi 0, %s35
      %s52 = sphi 0, %s36
      %s58 = sphi 0, %s60
      %s61 = sphi 0, %s58
      %s62 = sphi 0, %s61
      %s78 = sphi 0, %s62
      %s82 = sphi 0, %s82
      %s84 = sphi 0, %s82
      %s85 = sphi 0, %s84
      %s99 = sphi 0, %s85
      %s103 = sphi 0, %s103
      %s105 = sphi 0, %s103
      %s106 = sphi 0, %s105
      %s120 = sphi 0, %s106
      %s124 = sphi 0, %s124
      %s126 = sphi 0, %s124
      %s127 = sphi 0, %s126
      %s141 = sphi 0, %s127
      %s145 = sphi 0, %s145
      %s147 = sphi 0, %s145
      %s148 = sphi 0, %s147
      %s162 = sphi 0, %s148
      %s168 = sphi 0, %s170
      %s171 = sphi 0, %s168
      %s172 = sphi 0, %s171
      %s188 = sphi 0, %s172
    $region4: #{tpu_custom_call.1} parent=1 // loop_header_branch
      %25 = sbr.rel (%p23) target = $region8
    $region5: #{tpu_custom_call.1} parent=1 // loop_body
      %s27 = ssub.s32 %s22, 1
      %s28 = ssub.s32 %s22, 2
      %s29 = sadd.s32 %s22, 1
      %s30 = ssub.s32 %s22, %s29
      %p31 = scmp.eq.s32.totalorder %s30, 0
      %s33 = sadd.s32 %s32, 1
      %s34 = scalar_select %p31, %s32, %s33
      %p37 = pneg %p31
      %p38 = scmp.eq.s32.totalorder %s22, 1
      %p39 = por %p37, %p38
      %p40 = scmp.ne.s32.totalorder %s32, %s35
      %p41 = scmp.eq.s32.totalorder %s22, 0
      %p42 = por %p40, %p41
      %p43 = scmp.ne.s32.totalorder %s32, %s35
      %p44 = scmp.eq.s32.totalorder %s27, 1
      %p45 = por %p43, %p44
      %p46 = scmp.ne.s32.totalorder %s35, %s36
      %p47 = scmp.eq.s32.totalorder %s27, 0
      %p48 = por %p46, %p47
      %p49 = scmp.ne.s32.totalorder %s35, %s36
      %p50 = scmp.eq.s32.totalorder %s28, 1
      %p51 = por %p49, %p50
      %p53 = scmp.ne.s32.totalorder %s36, %s52
      %p54 = scmp.eq.s32.totalorder %s28, 0
      %p55 = por %p53, %p54
      %s56 = ssub.s32 %s22, %s29
      %p57 = scmp.eq.s32.totalorder %s56, 0
      %s59 = sadd.s32 %s58, 1
      %s60 = scalar_select %p57, %s58, %s59
      %p63 = pneg %p57
      %p64 = scmp.eq.s32.totalorder %s22, 1
      %p65 = por %p63, %p64
      %p66 = scmp.ne.s32.totalorder %s58, %s61
      %p67 = scmp.eq.s32.totalorder %s22, 0
      %p68 = por %p66, %p67
      %p69 = scmp.ne.s32.totalorder %s58, %s61
      %p70 = scmp.eq.s32.totalorder %s27, 1
      %p71 = por %p69, %p70
      %p72 = scmp.ne.s32.totalorder %s61, %s62
      %p73 = scmp.eq.s32.totalorder %s27, 0
      %p74 = por %p72, %p73
      %p75 = scmp.ne.s32.totalorder %s61, %s62
      %p76 = scmp.eq.s32.totalorder %s28, 1
      %p77 = por %p75, %p76
      %p79 = scmp.ne.s32.totalorder %s62, %s78
      %p80 = scmp.eq.s32.totalorder %s28, 0
      %p81 = por %p79, %p80
      %s83 = sadd.s32 %s82, 1
      %p86 = scmp.eq.s32.totalorder %s22, 1
      %p87 = scmp.ne.s32.totalorder %s82, %s84
      %p88 = scmp.eq.s32.totalorder %s22, 0
      %p89 = por %p87, %p88
      %p90 = scmp.ne.s32.totalorder %s82, %s84
      %p91 = scmp.eq.s32.totalorder %s27, 1
      %p92 = por %p90, %p91
      %p93 = scmp.ne.s32.totalorder %s84, %s85
      %p94 = scmp.eq.s32.totalorder %s27, 0
      %p95 = por %p93, %p94
      %p96 = scmp.ne.s32.totalorder %s84, %s85
      %p97 = scmp.eq.s32.totalorder %s28, 1
      %p98 = por %p96, %p97
      %p100 = scmp.ne.s32.totalorder %s85, %s99
      %p101 = scmp.eq.s32.totalorder %s28, 0
      %p102 = por %p100, %p101
      %s104 = sadd.s32 %s103, 1
      %p107 = scmp.eq.s32.totalorder %s22, 1
      %p108 = scmp.ne.s32.totalorder %s103, %s105
      %p109 = scmp.eq.s32.totalorder %s22, 0
      %p110 = por %p108, %p109
      %p111 = scmp.ne.s32.totalorder %s103, %s105
      %p112 = scmp.eq.s32.totalorder %s27, 1
      %p113 = por %p111, %p112
      %p114 = scmp.ne.s32.totalorder %s105, %s106
      %p115 = scmp.eq.s32.totalorder %s27, 0
      %p116 = por %p114, %p115
      %p117 = scmp.ne.s32.totalorder %s105, %s106
      %p118 = scmp.eq.s32.totalorder %s28, 1
      %p119 = por %p117, %p118
      %p121 = scmp.ne.s32.totalorder %s106, %s120
      %p122 = scmp.eq.s32.totalorder %s28, 0
      %p123 = por %p121, %p122
      %s125 = sadd.s32 %s124, 1
      %p128 = scmp.eq.s32.totalorder %s22, 1
      %p129 = scmp.ne.s32.totalorder %s124, %s126
      %p130 = scmp.eq.s32.totalorder %s22, 0
      %p131 = por %p129, %p130
      %p132 = scmp.ne.s32.totalorder %s124, %s126
      %p133 = scmp.eq.s32.totalorder %s27, 1
      %p134 = por %p132, %p133
      %p135 = scmp.ne.s32.totalorder %s126, %s127
      %p136 = scmp.eq.s32.totalorder %s27, 0
      %p137 = por %p135, %p136
      %p138 = scmp.ne.s32.totalorder %s126, %s127
      %p139 = scmp.eq.s32.totalorder %s28, 1
      %p140 = por %p138, %p139
      %p142 = scmp.ne.s32.totalorder %s127, %s141
      %p143 = scmp.eq.s32.totalorder %s28, 0
      %p144 = por %p142, %p143
      %s146 = sadd.s32 %s145, 1
      %p149 = scmp.eq.s32.totalorder %s22, 1
      %p150 = scmp.ne.s32.totalorder %s145, %s147
      %p151 = scmp.eq.s32.totalorder %s22, 0
      %p152 = por %p150, %p151
      %p153 = scmp.ne.s32.totalorder %s145, %s147
      %p154 = scmp.eq.s32.totalorder %s27, 1
      %p155 = por %p153, %p154
      %p156 = scmp.ne.s32.totalorder %s147, %s148
      %p157 = scmp.eq.s32.totalorder %s27, 0
      %p158 = por %p156, %p157
      %p159 = scmp.ne.s32.totalorder %s147, %s148
      %p160 = scmp.eq.s32.totalorder %s28, 1
      %p161 = por %p159, %p160
      %p163 = scmp.ne.s32.totalorder %s148, %s162
      %p164 = scmp.eq.s32.totalorder %s28, 0
      %p165 = por %p163, %p164
      %s166 = ssub.s32 %s22, %s29
      %p167 = scmp.eq.s32.totalorder %s166, 0
      %s169 = sadd.s32 %s168, 1
      %s170 = scalar_select %p167, %s168, %s169
      %p173 = pneg %p167
      %p174 = scmp.eq.s32.totalorder %s22, 1
      %p175 = por %p173, %p174
      %p176 = scmp.ne.s32.totalorder %s168, %s171
      %p177 = scmp.eq.s32.totalorder %s22, 0
      %p178 = por %p176, %p177
      %p179 = scmp.ne.s32.totalorder %s168, %s171
      %p180 = scmp.eq.s32.totalorder %s27, 1
      %p181 = por %p179, %p180
      %p182 = scmp.ne.s32.totalorder %s171, %s172
      %p183 = scmp.eq.s32.totalorder %s27, 0
      %p184 = por %p182, %p183
      %p185 = scmp.ne.s32.totalorder %s171, %s172
      %p186 = scmp.eq.s32.totalorder %s28, 1
      %p187 = por %p185, %p186
      %p189 = scmp.ne.s32.totalorder %s172, %s188
      %p190 = scmp.eq.s32.totalorder %s28, 0
      %p191 = por %p189, %p190
      %p192 = scmp.le.s32.totalorder 1, %s22
      %p193 = scmp.lt.s32.totalorder %s22, 3
      %p194 = pnand %p192, %p193
      %p195 = pneg %p194
      // Predicated region
      $region9: #{tpu_custom_call.1} parent=5 // pred_check
        _
      $region10: #{tpu_custom_call.1} parent=5 // pred_check_branch
        %197 = sbr.rel (%p194) target = $region12
      $region11: #{tpu_custom_call.1} parent=5 // pred_region
        %s198 = ssub.s32 %s22, 1
        // Predicated region
        $region13: #{tpu_custom_call.1} parent=11 // pred_check
          %p199 = pneg %p95
        $region14: #{tpu_custom_call.1} parent=11 // pred_check_branch
          %201 = sbr.rel (%p199) target = $region16
        $region15: #{tpu_custom_call.1} parent=11 // pred_region
          %s203 = ssub.s32 512, 512
          %204 = vsyncadd [#allocation6], %s203
          %s205 = sshll.u32 [#allocation7], 4
          %s206 = int_to_ptr.vmem [resolvable:$true] %s205
          %211 = dma.hbm_to_vmem [thread:$0]  %s2, 512, %s206, [#allocation6], 128, 128, 8
        $region16: #{tpu_custom_call.1} parent=11 // pred_fallthru
          _
        // Predicated region
        $region17: #{tpu_custom_call.1} parent=11 // pred_check
          %p212 = pneg %p116
        $region18: #{tpu_custom_call.1} parent=11 // pred_check_branch
          %214 = sbr.rel (%p212) target = $region20
        $region19: #{tpu_custom_call.1} parent=11 // pred_region
          _
        $region20: #{tpu_custom_call.1} parent=11 // pred_fallthru
          _
        // Predicated region
        $region21: #{tpu_custom_call.1} parent=11 // pred_check
          %p215 = pneg %p137
        $region22: #{tpu_custom_call.1} parent=11 // pred_check_branch
          %217 = sbr.rel (%p215) target = $region24
        $region23: #{tpu_custom_call.1} parent=11 // pred_region
          %s219 = ssub.s32 512, 512
          %220 = vsyncadd [#allocation9], %s219
          %s221 = sshll.u32 [#allocation8], 4
          %s222 = int_to_ptr.vmem [resolvable:$true] %s221
          %227 = dma.hbm_to_vmem [thread:$0]  %s4, 512, %s222, [#allocation9], 128, 128, 8
        $region24: #{tpu_custom_call.1} parent=11 // pred_fallthru
          _
        // Predicated region
        $region25: #{tpu_custom_call.1} parent=11 // pred_check
          %p228 = pneg %p158
        $region26: #{tpu_custom_call.1} parent=11 // pred_check_branch
          %230 = sbr.rel (%p228) target = $region28
        $region27: #{tpu_custom_call.1} parent=11 // pred_region
          _
        $region28: #{tpu_custom_call.1} parent=11 // pred_fallthru
          _
      $region12: #{tpu_custom_call.1} parent=5 // pred_fallthru
        _
      %p231 = scmp.lt.s32.totalorder %s22, 2
      // Predicated region
      $region29: #{tpu_custom_call.1} parent=5 // pred_check
        %p232 = pneg %p231
      $region30: #{tpu_custom_call.1} parent=5 // pred_check_branch
        %234 = sbr.rel (%p232) target = $region32
      $region31: #{tpu_custom_call.1} parent=5 // pred_region
        // Predicated region
        $region33: #{tpu_custom_call.1} parent=31 // pred_check
          %p235 = pneg %p42
        $region34: #{tpu_custom_call.1} parent=31 // pred_check_branch
          %237 = sbr.rel (%p235) target = $region36
        $region35: #{tpu_custom_call.1} parent=31 // pred_region
          %s238 = sand.u32 %s32, 1
          %s239 = scalar_lea.sflag [#allocation3], %s238
          %s240 = sand.u32 %s32, 1
          %s241 = smul.addr %s240, 32
          %s242 = scalar_lea.vmem [#allocation2], %s241
          %s243 = smul.u32 4, %s22
          %s245 = ssub.s32 512, 512
          %246 = vsyncadd %s239, %s245
          %s247 = smul.addr %s243, 128
          %s248 = scalar_lea.hbm %s0, %s247
          %s249 = sshll.u32 %s242, 4
          %s250 = int_to_ptr.vmem [resolvable:$true] %s249
          %255 = dma.hbm_to_vmem [thread:$0]  %s248, 512, %s250, %s239, 128, 128, 8
        $region36: #{tpu_custom_call.1} parent=31 // pred_fallthru
          _
        // Predicated region
        $region37: #{tpu_custom_call.1} parent=31 // pred_check
          %p256 = pneg %p68
        $region38: #{tpu_custom_call.1} parent=31 // pred_check_branch
          %258 = sbr.rel (%p256) target = $region40
        $region39: #{tpu_custom_call.1} parent=31 // pred_region
          %s259 = sand.u32 %s22, 1
          %s260 = scalar_lea.sflag [#allocation6], %s259
          %s261 = sand.u32 %s58, 1
          %s262 = smul.addr %s261, 32
          %s263 = scalar_lea.vmem [#allocation5], %s262
          %s264 = smul.u32 4, %s22
          %s266 = ssub.s32 512, 512
          %267 = vsyncadd %s260, %s266
          %s268 = smul.addr %s264, 128
          %s269 = scalar_lea.hbm %s1, %s268
          %s270 = sshll.u32 %s263, 4
          %s271 = int_to_ptr.vmem [resolvable:$true] %s270
          %276 = dma.hbm_to_vmem [thread:$0]  %s269, 512, %s271, %s260, 128, 128, 8
        $region40: #{tpu_custom_call.1} parent=31 // pred_fallthru
          _
      $region32: #{tpu_custom_call.1} parent=5 // pred_fallthru
        _
      %p277 = scmp.le.s32.totalorder 1, %s22
      %p278 = scmp.lt.s32.totalorder %s22, 3
      %p279 = pnand %p277, %p278
      %p280 = pneg %p279
      // Predicated region
      $region41: #{tpu_custom_call.1} parent=5 // pred_check
        _
      $region42: #{tpu_custom_call.1} parent=5 // pred_check_branch
        %282 = sbr.rel (%p279) target = $region44
      $region43: #{tpu_custom_call.1} parent=5 // pred_region
        %s283 = ssub.s32 %s22, 1
        %s284 = sand.u32 %s35, 1
        %s285 = scalar_lea.sflag [#allocation3], %s284
        %s286 = sand.u32 %s35, 1
        %s287 = smul.addr %s286, 32
        %s288 = scalar_lea.vmem [#allocation2], %s287
        // Predicated region
        $region45: #{tpu_custom_call.1} parent=43 // pred_check
          %p289 = pneg %p48
        $region46: #{tpu_custom_call.1} parent=43 // pred_check_branch
          %291 = sbr.rel (%p289) target = $region48
        $region47: #{tpu_custom_call.1} parent=43 // pred_region
          %292 = dma.done %s285, 512
        $region48: #{tpu_custom_call.1} parent=43 // pred_fallthru
          _
        %s293 = sand.u32 %s27, 1
        %s294 = scalar_lea.sflag [#allocation6], %s293
        %s295 = sand.u32 %s61, 1
        %s296 = smul.addr %s295, 32
        %s297 = scalar_lea.vmem [#allocation5], %s296
        // Predicated region
        $region49: #{tpu_custom_call.1} parent=43 // pred_check
          %p298 = pneg %p74
        $region50: #{tpu_custom_call.1} parent=43 // pred_check_branch
          %300 = sbr.rel (%p298) target = $region52
        $region51: #{tpu_custom_call.1} parent=43 // pred_region
          %301 = dma.done %s294, 512
        $region52: #{tpu_custom_call.1} parent=43 // pred_fallthru
          _
        // Predicated region
        $region53: #{tpu_custom_call.1} parent=43 // pred_check
          %p302 = pneg %p95
        $region54: #{tpu_custom_call.1} parent=43 // pred_check_branch
          %304 = sbr.rel (%p302) target = $region56
        $region55: #{tpu_custom_call.1} parent=43 // pred_region
          %305 = dma.done [#allocation6], 512
        $region56: #{tpu_custom_call.1} parent=43 // pred_fallthru
          _
        // Predicated region
        $region57: #{tpu_custom_call.1} parent=43 // pred_check
          %p306 = pneg %p137
        $region58: #{tpu_custom_call.1} parent=43 // pred_check_branch
          %308 = sbr.rel (%p306) target = $region60
        $region59: #{tpu_custom_call.1} parent=43 // pred_region
          %309 = dma.done [#allocation9], 512
        $region60: #{tpu_custom_call.1} parent=43 // pred_fallthru
          _
        %s310 = sand.u32 %s35, 1
        %s311 = scalar_lea.sflag [#allocation3], %s310
        %s312 = sand.u32 %s35, 1
        %s313 = smul.addr %s312, 32
        %s314 = scalar_lea.vmem [#allocation2], %s313
        %p315 = pneg %p48
        %p316 = pneg %p45
        %s317 = sand.u32 %s27, 1
        %s318 = scalar_lea.sflag [#allocation6], %s317
        %s319 = sand.u32 %s61, 1
        %s320 = smul.addr %s319, 32
        %s321 = scalar_lea.vmem [#allocation5], %s320
        %p322 = pneg %p74
        %p323 = pneg %p71
        %p324 = pneg %p95
        %p325 = pneg %p92
        %p326 = pneg %p116
        %p327 = pneg %p113
        %p328 = pneg %p137
        %p329 = pneg %p134
        %p330 = pneg %p158
        %p331 = pneg %p155
        %p332 = pneg %p184
        %p333 = pneg %p181
        %s334 = sand.u32 %s171, 1
        %s335 = scalar_lea.sflag [#allocation4], %s334
        %s336 = sand.u32 %s171, 1
        %s337 = smul.addr %s336, 8
        %s338 = scalar_lea.vmem [#allocation10], %s337
        %s339 = smul.u32 4, %s27
        %s340 = smul.u32 4, %s27
        %v342 = vld [vmem:[%s288] sm:$0xff]
        %v343 = vld [vmem:[%s288 + $0x8] sm:$0xff]
        %v344 = vld [vmem:[%s288 + $0x10] sm:$0xff]
        %v345 = vld [vmem:[%s288 + $0x18] sm:$0xff]
        %v346 = vld [vmem:[%s297] sm:$0xff]
        %v347 = vld [vmem:[%s297 + $0x8] sm:$0xff]
        %v348 = vld [vmem:[%s297 + $0x10] sm:$0xff]
        %v349 = vld [vmem:[%s297 + $0x18] sm:$0xff]
        %v350 = vld [vmem:[#allocation7] sm:$0xff]
        %v351 = vld [vmem:[#allocation7 + $0x8] sm:$0xff]
        %v352 = vld [vmem:[#allocation7 + $0x10] sm:$0xff]
        %v353 = vld [vmem:[#allocation7 + $0x18] sm:$0xff]
        %v354 = vld [vmem:[%s3] sm:$0x1]
        %v356 = vlaneseq
        %v357 = vshrl.u32 %v356, 7
        %v358 = vsub.s32 0, %v357
        %v359 = vrot.slane %v354, %v358
        %vm361 = vcmask 261120
        %v363 = vsel %vm361, %v342, 0
        %v366 = vsel %vm361, %v343, 0
        %v369 = vsel %vm361, %v344, 0
        %v372 = vsel %vm361, %v345, 0
        %374 = vmatprep.subr.mxu0 0.0
        %375 = vmatpush1.msra.mxu0 %v350
        %376 = vmatprep.subr.mxu0 0.0
        %377 = vmatpush1.msra.mxu0 %v351
        %378 = vmatprep.subr.mxu0 0.0
        %379 = vmatpush1.msra.mxu0 %v352
        %380 = vmatprep.subr.mxu0 0.0
        %381 = vmatpush1.msra.mxu0 %v353
        %382 = vmatprep.subr.mxu0 0.0
        %383 = vmatpush1.msra.mxu0 0.0
        %384 = vmatprep.subr.mxu0 0.0
        %385 = vmatpush1.msra.mxu0 0.0
        %386 = vmatprep.subr.mxu0 0.0
        %387 = vmatpush1.msra.mxu0 0.0
        %388 = vmatprep.subr.mxu0 0.0
        %389 = vmatpush1.msra.mxu0 0.0
        %390 = vmatprep.subr.mxu0 0.0
        %391 = vmatpush1.msra.mxu0 0.0
        %392 = vmatprep.subr.mxu0 0.0
        %393 = vmatpush1.msra.mxu0 0.0
        %394 = vmatprep.subr.mxu0 0.0
        %395 = vmatpush1.msra.mxu0 0.0
        %396 = vmatprep.subr.mxu0 0.0
        %397 = vmatpush1.msra.mxu0 0.0
        %398 = vmatprep.subr.mxu0 0.0
        %399 = vmatpush1.msra.mxu0 0.0
        %400 = vmatprep.subr.mxu0 0.0
        %401 = vmatpush1.msra.mxu0 0.0
        %402 = vmatprep.subr.mxu0 0.0
        %403 = vmatpush1.msra.mxu0 0.0
        %404 = vmatprep.subr.mxu0 0.0
        %405 = vmatpush1.msra.mxu0 0.0
        %406 = vmatprep.subr.mxu0 0.0
        %407 = vmatpush1.msra.mxu0 0.0
        %408 = vmatprep.subr.mxu0 0.0
        %409 = vmatpush1.msra.mxu0 0.0
        %410 = vmatprep.subr.mxu0 0.0
        %411 = vmatpush1.msra.mxu0 0.0
        %412 = vmatprep.subr.mxu0 0.0
        %413 = vmatpush1.msra.mxu0 0.0
        %414 = vmatprep.subr.mxu0 0.0
        %415 = vmatpush1.msra.mxu0 0.0
        %416 = vmatprep.subr.mxu0 0.0
        %417 = vmatpush1.msra.mxu0 0.0
        %418 = vmatprep.subr.mxu0 0.0
        %419 = vmatpush1.msra.mxu0 0.0
        %420 = vmatprep.subr.mxu0 0.0
        %421 = vmatpush1.msra.mxu0 0.0
        %422 = vmatprep.subr.mxu0 0.0
        %423 = vmatpush1.msra.mxu0 0.0
        %424 = vmatprep.subr.mxu0 0.0
        %425 = vmatpush1.msra.mxu0 0.0
        %426 = vmatprep.subr.mxu0 0.0
        %427 = vmatpush1.msra.mxu0 0.0
        %428 = vmatprep.subr.mxu0 0.0
        %429 = vmatpush1.msra.mxu0 0.0
        %430 = vmatprep.subr.mxu0 0.0
        %431 = vmatpush1.msra.mxu0 0.0
        %432 = vmatprep.subr.mxu0 0.0
        %433 = vmatpush1.msra.mxu0 0.0
        %434 = vmatprep.subr.mxu0 0.0
        %435 = vmatpush1.msra.mxu0 0.0
        %436 = vmatprep.subr.mxu0 0.0
        %437 = vmatpush1.msra.mxu0 0.0
        %438 = vmatprep.mubr.f32.mxu0 0.0
        %439 = vmatmul.mubr.f32.gmra.mrb[0].mxu0 %v363
        %v440 = vpop.f32.mrb[0].mxu0
        %v441 = vadd.f32 %v359, %v440
        %v442 = vpop.f32.mrb[0].mxu0
        %443 = vmatprep.mubr.f32.mxu0 0.0
        %444 = vmatmul.mubr.f32.gmra.mrb[0].mxu0 %v366
        %v445 = vpop.f32.mrb[0].mxu0
        %v446 = vadd.f32 %v359, %v445
        %v447 = vpop.f32.mrb[0].mxu0
        %448 = vmatprep.mubr.f32.mxu0 0.0
        %449 = vmatmul.mubr.f32.gmra.mrb[0].mxu0 %v369
        %v450 = vpop.f32.mrb[0].mxu0
        %v451 = vadd.f32 %v359, %v450
        %v452 = vpop.f32.mrb[0].mxu0
        %453 = vmatprep.mubr.f32.mxu0 0.0
        %454 = vmatmul.mubr.f32.gmra.mrb[0].mxu0 %v372
        %v455 = vpop.f32.mrb[0].mxu0
        %v456 = vadd.f32 %v359, %v455
        %v457 = vpop.f32.mrb[0].mxu0
        %458 = vdwg.mxu0
        %v459 = vld [vmem:[#allocation8] sm:$0xff]
        %v460 = vld [vmem:[#allocation8 + $0x8] sm:$0xff]
        %v461 = vld [vmem:[#allocation8 + $0x10] sm:$0xff]
        %v462 = vld [vmem:[#allocation8 + $0x18] sm:$0xff]
        %v463 = vld [vmem:[%s5] sm:$0x1]
        %v465 = vlaneseq
        %v466 = vshrl.u32 %v465, 7
        %v467 = vsub.s32 0, %v466
        %v468 = vrot.slane %v463, %v467
        %v471 = vsel %vm361, %v346, 0
        %v474 = vsel %vm361, %v347, 0
        %v477 = vsel %vm361, %v348, 0
        %v480 = vsel %vm361, %v349, 0
        %482 = vmatprep.subr.mxu0 0.0
        %483 = vmatpush1.msra.mxu0 %v459
        %484 = vmatprep.subr.mxu0 0.0
        %485 = vmatpush1.msra.mxu0 %v460
        %486 = vmatprep.subr.mxu0 0.0
        %487 = vmatpush1.msra.mxu0 %v461
        %488 = vmatprep.subr.mxu0 0.0
        %489 = vmatpush1.msra.mxu0 %v462
        %490 = vmatprep.subr.mxu0 0.0
        %491 = vmatpush1.msra.mxu0 0.0
        %492 = vmatprep.subr.mxu0 0.0
        %493 = vmatpush1.msra.mxu0 0.0
        %494 = vmatprep.subr.mxu0 0.0
        %495 = vmatpush1.msra.mxu0 0.0
        %496 = vmatprep.subr.mxu0 0.0
        %497 = vmatpush1.msra.mxu0 0.0
        %498 = vmatprep.subr.mxu0 0.0
        %499 = vmatpush1.msra.mxu0 0.0
        %500 = vmatprep.subr.mxu0 0.0
        %501 = vmatpush1.msra.mxu0 0.0
        %502 = vmatprep.subr.mxu0 0.0
        %503 = vmatpush1.msra.mxu0 0.0
        %504 = vmatprep.subr.mxu0 0.0
        %505 = vmatpush1.msra.mxu0 0.0
        %506 = vmatprep.subr.mxu0 0.0
        %507 = vmatpush1.msra.mxu0 0.0
        %508 = vmatprep.subr.mxu0 0.0
        %509 = vmatpush1.msra.mxu0 0.0
        %510 = vmatprep.subr.mxu0 0.0
        %511 = vmatpush1.msra.mxu0 0.0
        %512 = vmatprep.subr.mxu0 0.0
        %513 = vmatpush1.msra.mxu0 0.0
        %514 = vmatprep.subr.mxu0 0.0
        %515 = vmatpush1.msra.mxu0 0.0
        %516 = vmatprep.subr.mxu0 0.0
        %517 = vmatpush1.msra.mxu0 0.0
        %518 = vmatprep.subr.mxu0 0.0
        %519 = vmatpush1.msra.mxu0 0.0
        %520 = vmatprep.subr.mxu0 0.0
        %521 = vmatpush1.msra.mxu0 0.0
        %522 = vmatprep.subr.mxu0 0.0
        %523 = vmatpush1.msra.mxu0 0.0
        %524 = vmatprep.subr.mxu0 0.0
        %525 = vmatpush1.msra.mxu0 0.0
        %526 = vmatprep.subr.mxu0 0.0
        %527 = vmatpush1.msra.mxu0 0.0
        %528 = vmatprep.subr.mxu0 0.0
        %529 = vmatpush1.msra.mxu0 0.0
        %530 = vmatprep.subr.mxu0 0.0
        %531 = vmatpush1.msra.mxu0 0.0
        %532 = vmatprep.subr.mxu0 0.0
        %533 = vmatpush1.msra.mxu0 0.0
        %534 = vmatprep.subr.mxu0 0.0
        %535 = vmatpush1.msra.mxu0 0.0
        %536 = vmatprep.subr.mxu0 0.0
        %537 = vmatpush1.msra.mxu0 0.0
        %538 = vmatprep.subr.mxu0 0.0
        %539 = vmatpush1.msra.mxu0 0.0
        %540 = vmatprep.subr.mxu0 0.0
        %541 = vmatpush1.msra.mxu0 0.0
        %542 = vmatprep.subr.mxu0 0.0
        %543 = vmatpush1.msra.mxu0 0.0
        %544 = vmatprep.subr.mxu0 0.0
        %545 = vmatpush1.msra.mxu0 0.0
        %546 = vmatprep.mubr.f32.mxu0 0.0
        %547 = vmatmul.mubr.f32.gmra.mrb[0].mxu0 %v471
        %v548 = vpop.f32.mrb[0].mxu0
        %v549 = vadd.f32 %v468, %v548
        %v550 = vpop.f32.mrb[0].mxu0
        %551 = vmatprep.mubr.f32.mxu0 0.0
        %552 = vmatmul.mubr.f32.gmra.mrb[0].mxu0 %v474
        %v553 = vpop.f32.mrb[0].mxu0
        %v554 = vadd.f32 %v468, %v553
        %v555 = vpop.f32.mrb[0].mxu0
        %556 = vmatprep.mubr.f32.mxu0 0.0
        %557 = vmatmul.mubr.f32.gmra.mrb[0].mxu0 %v477
        %v558 = vpop.f32.mrb[0].mxu0
        %v559 = vadd.f32 %v468, %v558
        %v560 = vpop.f32.mrb[0].mxu0
        %561 = vmatprep.mubr.f32.mxu0 0.0
        %562 = vmatmul.mubr.f32.gmra.mrb[0].mxu0 %v480
        %v563 = vpop.f32.mrb[0].mxu0
        %v564 = vadd.f32 %v468, %v563
        %v565 = vpop.f32.mrb[0].mxu0
        %566 = vdwg.mxu0
        %v567 = vpack.c.bf16 %v441, %v441
        %v568 = vpack.c.bf16 %v446, %v446
        %v569 = vpack.c.bf16 %v451, %v451
        %v570 = vpack.c.bf16 %v456, %v456
        %v571 = vpack.c.bf16 %v549, %v549
        %v572 = vpack.c.bf16 %v554, %v554
        %v573 = vpack.c.bf16 %v559, %v559
        %v574 = vpack.c.bf16 %v564, %v564
        %v576 = vsel %vm361, %v567, 0
        %v579 = vsel %vm361, %v571, 0
        %581 = vmatprep.subr.bf16.mxu0 0
        %582 = vmatpush1.bf16.xpose.msra.mxu0 %v579
        %583 = vmatprep.subr.bf16.mxu0 0
        %584 = vmatpush1.bf16.xpose.msra.mxu0 0
        %585 = vmatprep.subr.bf16.mxu0 0
        %586 = vmatpush1.bf16.xpose.msra.mxu0 0
        %587 = vmatprep.subr.bf16.mxu0 0
        %588 = vmatpush1.bf16.xpose.msra.mxu0 0
        %589 = vmatprep.subr.bf16.mxu0 0
        %590 = vmatpush1.bf16.xpose.msra.mxu0 0
        %591 = vmatprep.subr.bf16.mxu0 0
        %592 = vmatpush1.bf16.xpose.msra.mxu0 0
        %593 = vmatprep.subr.bf16.mxu0 0
        %594 = vmatpush1.bf16.xpose.msra.mxu0 0
        %595 = vmatprep.subr.bf16.mxu0 0
        %596 = vmatpush1.bf16.xpose.msra.mxu0 0
        %597 = vmatprep.subr.bf16.mxu0 0
        %598 = vmatpush1.bf16.xpose.msra.mxu0 0
        %599 = vmatprep.subr.bf16.mxu0 0
        %600 = vmatpush1.bf16.xpose.msra.mxu0 0
        %601 = vmatprep.subr.bf16.mxu0 0
        %602 = vmatpush1.bf16.xpose.msra.mxu0 0
        %603 = vmatprep.subr.bf16.mxu0 0
        %604 = vmatpush1.bf16.xpose.msra.mxu0 0
        %605 = vmatprep.subr.bf16.mxu0 0
        %606 = vmatpush1.bf16.xpose.msra.mxu0 0
        %607 = vmatprep.subr.bf16.mxu0 0
        %608 = vmatpush1.bf16.xpose.msra.mxu0 0
        %609 = vmatprep.subr.bf16.mxu0 0
        %610 = vmatpush1.bf16.xpose.msra.mxu0 0
        %611 = vmatprep.subr.bf16.mxu0 0
        %612 = vmatpush1.bf16.xpose.msra.mxu0 0
        %613 = vmatprep.mubr.bf16.mxu0 0
        %614 = vmatmul.mubr.bf16.gmra.mrb[0].mxu0 %v576
        %v615 = vpop.f32.mrb[0].mxu0
        %v616 = vadd.f32 0.0, %v615
        %v617 = vpop.f32.mrb[0].mxu0
        %v618 = vpop.f32.mrb[0].mxu0
        %v619 = vpop.f32.mrb[0].mxu0
        %620 = vdwg.mxu0
        %v622 = vsel %vm361, %v568, 0
        %v625 = vsel %vm361, %v572, 0
        %627 = vmatprep.subr.bf16.mxu0 0
        %628 = vmatpush1.bf16.xpose.msra.mxu0 %v625
        %629 = vmatprep.subr.bf16.mxu0 0
        %630 = vmatpush1.bf16.xpose.msra.mxu0 0
        %631 = vmatprep.subr.bf16.mxu0 0
        %632 = vmatpush1.bf16.xpose.msra.mxu0 0
        %633 = vmatprep.subr.bf16.mxu0 0
        %634 = vmatpush1.bf16.xpose.msra.mxu0 0
        %635 = vmatprep.subr.bf16.mxu0 0
        %636 = vmatpush1.bf16.xpose.msra.mxu0 0
        %637 = vmatprep.subr.bf16.mxu0 0
        %638 = vmatpush1.bf16.xpose.msra.mxu0 0
        %639 = vmatprep.subr.bf16.mxu0 0
        %640 = vmatpush1.bf16.xpose.msra.mxu0 0
        %641 = vmatprep.subr.bf16.mxu0 0
        %642 = vmatpush1.bf16.xpose.msra.mxu0 0
        %643 = vmatprep.subr.bf16.mxu0 0
        %644 = vmatpush1.bf16.xpose.msra.mxu0 0
        %645 = vmatprep.subr.bf16.mxu0 0
        %646 = vmatpush1.bf16.xpose.msra.mxu0 0
        %647 = vmatprep.subr.bf16.mxu0 0
        %648 = vmatpush1.bf16.xpose.msra.mxu0 0
        %649 = vmatprep.subr.bf16.mxu0 0
        %650 = vmatpush1.bf16.xpose.msra.mxu0 0
        %651 = vmatprep.subr.bf16.mxu0 0
        %652 = vmatpush1.bf16.xpose.msra.mxu0 0
        %653 = vmatprep.subr.bf16.mxu0 0
        %654 = vmatpush1.bf16.xpose.msra.mxu0 0
        %655 = vmatprep.subr.bf16.mxu0 0
        %656 = vmatpush1.bf16.xpose.msra.mxu0 0
        %657 = vmatprep.subr.bf16.mxu0 0
        %658 = vmatpush1.bf16.xpose.msra.mxu0 0
        %659 = vmatprep.mubr.bf16.mxu0 0
        %660 = vmatmul.mubr.bf16.gmra.mrb[0].mxu0 %v622
        %v661 = vpop.f32.mrb[0].mxu0
        %v662 = vadd.f32 0.0, %v661
        %v663 = vpop.f32.mrb[0].mxu0
        %v664 = vpop.f32.mrb[0].mxu0
        %v665 = vpop.f32.mrb[0].mxu0
        %666 = vdwg.mxu0
        %v668 = vsel %vm361, %v569, 0
        %v671 = vsel %vm361, %v573, 0
        %673 = vmatprep.subr.bf16.mxu0 0
        %674 = vmatpush1.bf16.xpose.msra.mxu0 %v671
        %675 = vmatprep.subr.bf16.mxu0 0
        %676 = vmatpush1.bf16.xpose.msra.mxu0 0
        %677 = vmatprep.subr.bf16.mxu0 0
        %678 = vmatpush1.bf16.xpose.msra.mxu0 0
        %679 = vmatprep.subr.bf16.mxu0 0
        %680 = vmatpush1.bf16.xpose.msra.mxu0 0
        %681 = vmatprep.subr.bf16.mxu0 0
        %682 = vmatpush1.bf16.xpose.msra.mxu0 0
        %683 = vmatprep.subr.bf16.mxu0 0
        %684 = vmatpush1.bf16.xpose.msra.mxu0 0
        %685 = vmatprep.subr.bf16.mxu0 0
        %686 = vmatpush1.bf16.xpose.msra.mxu0 0
        %687 = vmatprep.subr.bf16.mxu0 0
        %688 = vmatpush1.bf16.xpose.msra.mxu0 0
        %689 = vmatprep.subr.bf16.mxu0 0
        %690 = vmatpush1.bf16.xpose.msra.mxu0 0
        %691 = vmatprep.subr.bf16.mxu0 0
        %692 = vmatpush1.bf16.xpose.msra.mxu0 0
        %693 = vmatprep.subr.bf16.mxu0 0
        %694 = vmatpush1.bf16.xpose.msra.mxu0 0
        %695 = vmatprep.subr.bf16.mxu0 0
        %696 = vmatpush1.bf16.xpose.msra.mxu0 0
        %697 = vmatprep.subr.bf16.mxu0 0
        %698 = vmatpush1.bf16.xpose.msra.mxu0 0
        %699 = vmatprep.subr.bf16.mxu0 0
        %700 = vmatpush1.bf16.xpose.msra.mxu0 0
        %701 = vmatprep.subr.bf16.mxu0 0
        %702 = vmatpush1.bf16.xpose.msra.mxu0 0
        %703 = vmatprep.subr.bf16.mxu0 0
        %704 = vmatpush1.bf16.xpose.msra.mxu0 0
        %705 = vmatprep.mubr.bf16.mxu0 0
        %706 = vmatmul.mubr.bf16.gmra.mrb[0].mxu0 %v668
        %v707 = vpop.f32.mrb[0].mxu0
        %v708 = vadd.f32 0.0, %v707
        %v709 = vpop.f32.mrb[0].mxu0
        %v710 = vpop.f32.mrb[0].mxu0
        %v711 = vpop.f32.mrb[0].mxu0
        %712 = vdwg.mxu0
        %v714 = vsel %vm361, %v570, 0
        %v717 = vsel %vm361, %v574, 0
        %719 = vmatprep.subr.bf16.mxu0 0
        %720 = vmatpush1.bf16.xpose.msra.mxu0 %v717
        %721 = vmatprep.subr.bf16.mxu0 0
        %722 = vmatpush1.bf16.xpose.msra.mxu0 0
        %723 = vmatprep.subr.bf16.mxu0 0
        %724 = vmatpush1.bf16.xpose.msra.mxu0 0
        %725 = vmatprep.subr.bf16.mxu0 0
        %726 = vmatpush1.bf16.xpose.msra.mxu0 0
        %727 = vmatprep.subr.bf16.mxu0 0
        %728 = vmatpush1.bf16.xpose.msra.mxu0 0
        %729 = vmatprep.subr.bf16.mxu0 0
        %730 = vmatpush1.bf16.xpose.msra.mxu0 0
        %731 = vmatprep.subr.bf16.mxu0 0
        %732 = vmatpush1.bf16.xpose.msra.mxu0 0
        %733 = vmatprep.subr.bf16.mxu0 0
        %734 = vmatpush1.bf16.xpose.msra.mxu0 0
        %735 = vmatprep.subr.bf16.mxu0 0
        %736 = vmatpush1.bf16.xpose.msra.mxu0 0
        %737 = vmatprep.subr.bf16.mxu0 0
        %738 = vmatpush1.bf16.xpose.msra.mxu0 0
        %739 = vmatprep.subr.bf16.mxu0 0
        %740 = vmatpush1.bf16.xpose.msra.mxu0 0
        %741 = vmatprep.subr.bf16.mxu0 0
        %742 = vmatpush1.bf16.xpose.msra.mxu0 0
        %743 = vmatprep.subr.bf16.mxu0 0
        %744 = vmatpush1.bf16.xpose.msra.mxu0 0
        %745 = vmatprep.subr.bf16.mxu0 0
        %746 = vmatpush1.bf16.xpose.msra.mxu0 0
        %747 = vmatprep.subr.bf16.mxu0 0
        %748 = vmatpush1.bf16.xpose.msra.mxu0 0
        %749 = vmatprep.subr.bf16.mxu0 0
        %750 = vmatpush1.bf16.xpose.msra.mxu0 0
        %751 = vmatprep.mubr.bf16.mxu0 0
        %752 = vmatmul.mubr.bf16.gmra.mrb[0].mxu0 %v714
        %v753 = vpop.f32.mrb[0].mxu0
        %v754 = vadd.f32 0.0, %v753
        %v755 = vpop.f32.mrb[0].mxu0
        %v756 = vpop.f32.mrb[0].mxu0
        %v757 = vpop.f32.mrb[0].mxu0
        %758 = vdwg.mxu0
        %vm759 = vcmask 64512
        %v760 = vsel %vm759, %v616, -inf
        %761 = vmax.xlane.f32.xlu0 %v760
        %v762 = vpop.xlane.xlu0 %761
        %v763 = vsel %vm759, %v662, -inf
        %764 = vmax.xlane.f32.xlu0 %v763
        %v765 = vpop.xlane.xlu0 %764
        %v766 = vsel %vm759, %v708, -inf
        %767 = vmax.xlane.f32.xlu0 %v766
        %v768 = vpop.xlane.xlu0 %767
        %v769 = vsel %vm759, %v754, -inf
        %770 = vmax.xlane.f32.xlu0 %v769
        %v771 = vpop.xlane.xlu0 %770
        %v772 = vsub.f32 %v616, %v762
        %v773 = vsub.f32 %v662, %v765
        %v774 = vsub.f32 %v708, %v768
        %v775 = vsub.f32 %v754, %v771
        %v776 = vmul.f32 %v772, 1.442695
        %v777 = vpow.pop %v776
        %v778 = vmul.f32 %v773, 1.442695
        %v779 = vpow.pop %v778
        %v780 = vmul.f32 %v774, 1.442695
        %v781 = vpow.pop %v780
        %v782 = vmul.f32 %v775, 1.442695
        %v783 = vpow.pop %v782
        %v784 = vsel %vm759, %v777, 0.0
        %785 = vadd.xlane.f32.xlu0 %v784
        %v786 = vpop.xlane.xlu0 %785
        %v787 = vsel %vm759, %v779, 0.0
        %788 = vadd.xlane.f32.xlu0 %v787
        %v789 = vpop.xlane.xlu0 %788
        %v790 = vsel %vm759, %v781, 0.0
        %791 = vadd.xlane.f32.xlu0 %v790
        %v792 = vpop.xlane.xlu0 %791
        %v793 = vsel %vm759, %v783, 0.0
        %794 = vadd.xlane.f32.xlu0 %v793
        %v795 = vpop.xlane.xlu0 %794
        %v796 = vrcp.pop %v786
        %v797 = vrcp.pop %v789
        %v798 = vrcp.pop %v792
        %v799 = vrcp.pop %v795
        %v800 = vmul.f32 %v777, %v796
        %v801 = vmul.f32 %v779, %v797
        %v802 = vmul.f32 %v781, %v798
        %v803 = vmul.f32 %v783, %v799
        %v804 = vpack.c.bf16 %v800, %v800
        %v805 = vpack.c.bf16 %v801, %v801
        %v806 = vpack.c.bf16 %v802, %v802
        %v807 = vpack.c.bf16 %v803, %v803
        %809 = vrot.lane.b32.xlu0 %v571, 96
        %v810 = vpop.permute.xlu0 %809
        %v812 = vsel %vm759, %v804, 0
        %vm814 = vcmask 1043456
        %v816 = vsel %vm814, %v810, 0
        %818 = vmatprep.subr.bf16.mxu0 0
        %819 = vmatpush1.bf16.msra.mxu0 %v816
        %820 = vmatprep.subr.bf16.mxu0 0
        %821 = vmatpush1.bf16.msra.mxu0 0
        %822 = vmatprep.subr.bf16.mxu0 0
        %823 = vmatpush1.bf16.msra.mxu0 0
        %824 = vmatprep.subr.bf16.mxu0 0
        %825 = vmatpush1.bf16.msra.mxu0 0
        %826 = vmatprep.subr.bf16.mxu0 0
        %827 = vmatpush1.bf16.msra.mxu0 0
        %828 = vmatprep.subr.bf16.mxu0 0
        %829 = vmatpush1.bf16.msra.mxu0 0
        %830 = vmatprep.subr.bf16.mxu0 0
        %831 = vmatpush1.bf16.msra.mxu0 0
        %832 = vmatprep.subr.bf16.mxu0 0
        %833 = vmatpush1.bf16.msra.mxu0 0
        %834 = vmatprep.subr.bf16.mxu0 0
        %835 = vmatpush1.bf16.msra.mxu0 0
        %836 = vmatprep.subr.bf16.mxu0 0
        %837 = vmatpush1.bf16.msra.mxu0 0
        %838 = vmatprep.subr.bf16.mxu0 0
        %839 = vmatpush1.bf16.msra.mxu0 0
        %840 = vmatprep.subr.bf16.mxu0 0
        %841 = vmatpush1.bf16.msra.mxu0 0
        %842 = vmatprep.subr.bf16.mxu0 0
        %843 = vmatpush1.bf16.msra.mxu0 0
        %844 = vmatprep.subr.bf16.mxu0 0
        %845 = vmatpush1.bf16.msra.mxu0 0
        %846 = vmatprep.subr.bf16.mxu0 0
        %847 = vmatpush1.bf16.msra.mxu0 0
        %848 = vmatprep.subr.bf16.mxu0 0
        %849 = vmatpush1.bf16.msra.mxu0 0
        %850 = vmatprep.mubr.bf16.mxu0 0
        %851 = vmatmul.mubr.bf16.gmra.mrb[0].mxu0 %v812
        %v852 = vpop.f32.mrb[0].mxu0
        %v853 = vadd.f32 0.0, %v852
        %v854 = vpop.f32.mrb[0].mxu0
        %v855 = vpop.f32.mrb[0].mxu0
        %v856 = vpop.f32.mrb[0].mxu0
        %857 = vdwg.mxu0
        %859 = vrot.lane.b32.xlu0 %v572, 96
        %v860 = vpop.permute.xlu0 %859
        %v862 = vsel %vm759, %v805, 0
        %v865 = vsel %vm814, %v860, 0
        %867 = vmatprep.subr.bf16.mxu0 0
        %868 = vmatpush1.bf16.msra.mxu0 %v865
        %869 = vmatprep.subr.bf16.mxu0 0
        %870 = vmatpush1.bf16.msra.mxu0 0
        %871 = vmatprep.subr.bf16.mxu0 0
        %872 = vmatpush1.bf16.msra.mxu0 0
        %873 = vmatprep.subr.bf16.mxu0 0
        %874 = vmatpush1.bf16.msra.mxu0 0
        %875 = vmatprep.subr.bf16.mxu0 0
        %876 = vmatpush1.bf16.msra.mxu0 0
        %877 = vmatprep.subr.bf16.mxu0 0
        %878 = vmatpush1.bf16.msra.mxu0 0
        %879 = vmatprep.subr.bf16.mxu0 0
        %880 = vmatpush1.bf16.msra.mxu0 0
        %881 = vmatprep.subr.bf16.mxu0 0
        %882 = vmatpush1.bf16.msra.mxu0 0
        %883 = vmatprep.subr.bf16.mxu0 0
        %884 = vmatpush1.bf16.msra.mxu0 0
        %885 = vmatprep.subr.bf16.mxu0 0
        %886 = vmatpush1.bf16.msra.mxu0 0
        %887 = vmatprep.subr.bf16.mxu0 0
        %888 = vmatpush1.bf16.msra.mxu0 0
        %889 = vmatprep.subr.bf16.mxu0 0
        %890 = vmatpush1.bf16.msra.mxu0 0
        %891 = vmatprep.subr.bf16.mxu0 0
        %892 = vmatpush1.bf16.msra.mxu0 0
        %893 = vmatprep.subr.bf16.mxu0 0
        %894 = vmatpush1.bf16.msra.mxu0 0
        %895 = vmatprep.subr.bf16.mxu0 0
        %896 = vmatpush1.bf16.msra.mxu0 0
        %897 = vmatprep.subr.bf16.mxu0 0
        %898 = vmatpush1.bf16.msra.mxu0 0
        %899 = vmatprep.mubr.bf16.mxu0 0
        %900 = vmatmul.mubr.bf16.gmra.mrb[0].mxu0 %v862
        %v901 = vpop.f32.mrb[0].mxu0
        %v902 = vadd.f32 0.0, %v901
        %v903 = vpop.f32.mrb[0].mxu0
        %v904 = vpop.f32.mrb[0].mxu0
        %v905 = vpop.f32.mrb[0].mxu0
        %906 = vdwg.mxu0
        %908 = vrot.lane.b32.xlu0 %v573, 96
        %v909 = vpop.permute.xlu0 %908
        %v911 = vsel %vm759, %v806, 0
        %v914 = vsel %vm814, %v909, 0
        %916 = vmatprep.subr.bf16.mxu0 0
        %917 = vmatpush1.bf16.msra.mxu0 %v914
        %918 = vmatprep.subr.bf16.mxu0 0
        %919 = vmatpush1.bf16.msra.mxu0 0
        %920 = vmatprep.subr.bf16.mxu0 0
        %921 = vmatpush1.bf16.msra.mxu0 0
        %922 = vmatprep.subr.bf16.mxu0 0
        %923 = vmatpush1.bf16.msra.mxu0 0
        %924 = vmatprep.subr.bf16.mxu0 0
        %925 = vmatpush1.bf16.msra.mxu0 0
        %926 = vmatprep.subr.bf16.mxu0 0
        %927 = vmatpush1.bf16.msra.mxu0 0
        %928 = vmatprep.subr.bf16.mxu0 0
        %929 = vmatpush1.bf16.msra.mxu0 0
        %930 = vmatprep.subr.bf16.mxu0 0
        %931 = vmatpush1.bf16.msra.mxu0 0
        %932 = vmatprep.subr.bf16.mxu0 0
        %933 = vmatpush1.bf16.msra.mxu0 0
        %934 = vmatprep.subr.bf16.mxu0 0
        %935 = vmatpush1.bf16.msra.mxu0 0
        %936 = vmatprep.subr.bf16.mxu0 0
        %937 = vmatpush1.bf16.msra.mxu0 0
        %938 = vmatprep.subr.bf16.mxu0 0
        %939 = vmatpush1.bf16.msra.mxu0 0
        %940 = vmatprep.subr.bf16.mxu0 0
        %941 = vmatpush1.bf16.msra.mxu0 0
        %942 = vmatprep.subr.bf16.mxu0 0
        %943 = vmatpush1.bf16.msra.mxu0 0
        %944 = vmatprep.subr.bf16.mxu0 0
        %945 = vmatpush1.bf16.msra.mxu0 0
        %946 = vmatprep.subr.bf16.mxu0 0
        %947 = vmatpush1.bf16.msra.mxu0 0
        %948 = vmatprep.mubr.bf16.mxu0 0
        %949 = vmatmul.mubr.bf16.gmra.mrb[0].mxu0 %v911
        %v950 = vpop.f32.mrb[0].mxu0
        %v951 = vadd.f32 0.0, %v950
        %v952 = vpop.f32.mrb[0].mxu0
        %v953 = vpop.f32.mrb[0].mxu0
        %v954 = vpop.f32.mrb[0].mxu0
        %955 = vdwg.mxu0
        %957 = vrot.lane.b32.xlu0 %v574, 96
        %v958 = vpop.permute.xlu0 %957
        %v960 = vsel %vm759, %v807, 0
        %v963 = vsel %vm814, %v958, 0
        %965 = vmatprep.subr.bf16.mxu0 0
        %966 = vmatpush1.bf16.msra.mxu0 %v963
        %967 = vmatprep.subr.bf16.mxu0 0
        %968 = vmatpush1.bf16.msra.mxu0 0
        %969 = vmatprep.subr.bf16.mxu0 0
        %970 = vmatpush1.bf16.msra.mxu0 0
        %971 = vmatprep.subr.bf16.mxu0 0
        %972 = vmatpush1.bf16.msra.mxu0 0
        %973 = vmatprep.subr.bf16.mxu0 0
        %974 = vmatpush1.bf16.msra.mxu0 0
        %975 = vmatprep.subr.bf16.mxu0 0
        %976 = vmatpush1.bf16.msra.mxu0 0
        %977 = vmatprep.subr.bf16.mxu0 0
        %978 = vmatpush1.bf16.msra.mxu0 0
        %979 = vmatprep.subr.bf16.mxu0 0
        %980 = vmatpush1.bf16.msra.mxu0 0
        %981 = vmatprep.subr.bf16.mxu0 0
        %982 = vmatpush1.bf16.msra.mxu0 0
        %983 = vmatprep.subr.bf16.mxu0 0
        %984 = vmatpush1.bf16.msra.mxu0 0
        %985 = vmatprep.subr.bf16.mxu0 0
        %986 = vmatpush1.bf16.msra.mxu0 0
        %987 = vmatprep.subr.bf16.mxu0 0
        %988 = vmatpush1.bf16.msra.mxu0 0
        %989 = vmatprep.subr.bf16.mxu0 0
        %990 = vmatpush1.bf16.msra.mxu0 0
        %991 = vmatprep.subr.bf16.mxu0 0
        %992 = vmatpush1.bf16.msra.mxu0 0
        %993 = vmatprep.subr.bf16.mxu0 0
        %994 = vmatpush1.bf16.msra.mxu0 0
        %995 = vmatprep.subr.bf16.mxu0 0
        %996 = vmatpush1.bf16.msra.mxu0 0
        %997 = vmatprep.mubr.bf16.mxu0 0
        %998 = vmatmul.mubr.bf16.gmra.mrb[0].mxu0 %v960
        %v999 = vpop.f32.mrb[0].mxu0
        %v1000 = vadd.f32 0.0, %v999
        %v1001 = vpop.f32.mrb[0].mxu0
        %v1002 = vpop.f32.mrb[0].mxu0
        %v1003 = vpop.f32.mrb[0].mxu0
        %1004 = vdwg.mxu0
        %1006 = vrot.lane.b32.xlu0 %v902, 32
        %v1007 = vpop.permute.xlu0 %1006
        %1010 = vrot.lane.b32.xlu0 %v951, 64
        %v1011 = vpop.permute.xlu0 %1010
        %1014 = vrot.lane.b32.xlu0 %v1000, 96
        %v1015 = vpop.permute.xlu0 %1014
        %v1017 = vsel %vm361, %v853, %v1007
        %vm1018 = vcmask 523264
        %v1019 = vsel %vm1018, %v1017, %v1011
        %vm1020 = vcmask 785408
        %v1021 = vsel %vm1020, %v1019, %v1015
        %1022 = vst [vmem:[%s338] sm:$0xff] %v1021
        %s1023 = sand.u32 %s171, 1
        %s1024 = scalar_lea.sflag [#allocation4], %s1023
        %s1025 = sand.u32 %s171, 1
        %s1026 = smul.addr %s1025, 8
        %s1027 = scalar_lea.vmem [#allocation10], %s1026
        // Predicated region
        $region61: #{tpu_custom_call.1} parent=43 // pred_check
          %p1028 = pneg %p181
        $region62: #{tpu_custom_call.1} parent=43 // pred_check_branch
          %1030 = sbr.rel (%p1028) target = $region64
        $region63: #{tpu_custom_call.1} parent=43 // pred_region
          %s1032 = ssub.s32 128, 128
          %1033 = vsyncadd %s1024, %s1032
          %s1034 = smul.addr %s27, 128
          %s1035 = scalar_lea.hbm %s6, %s1034
          %s1037 = sshll.u32 %s1027, 4
          %s1038 = int_to_ptr.vmem [resolvable:$true] %s1037
          %1040 = dma.vmem_to_hbm [thread:$0]  %s1038, 128, %s1035, %s1024
        $region64: #{tpu_custom_call.1} parent=43 // pred_fallthru
          _
      $region44: #{tpu_custom_call.1} parent=5 // pred_fallthru
        _
      %p1041 = scmp.le.s32.totalorder 2, %s22
      // Predicated region
      $region65: #{tpu_custom_call.1} parent=5 // pred_check
        %p1042 = pneg %p1041
      $region66: #{tpu_custom_call.1} parent=5 // pred_check_branch
        %1044 = sbr.rel (%p1042) target = $region68
      $region67: #{tpu_custom_call.1} parent=5 // pred_region
        %s1045 = ssub.s32 %s22, 2
        // Predicated region
        $region69: #{tpu_custom_call.1} parent=67 // pred_check
          %p1046 = pneg %p187
        $region70: #{tpu_custom_call.1} parent=67 // pred_check_branch
          %1048 = sbr.rel (%p1046) target = $region72
        $region71: #{tpu_custom_call.1} parent=67 // pred_region
          %s1049 = sand.u32 %s172, 1
          %s1050 = scalar_lea.sflag [#allocation4], %s1049
          %s1051 = sand.u32 %s172, 1
          %s1052 = smul.addr %s1051, 8
          %s1053 = scalar_lea.vmem [#allocation10], %s1052
          %1054 = dma.done %s1050, 128
        $region72: #{tpu_custom_call.1} parent=67 // pred_fallthru
          _
      $region68: #{tpu_custom_call.1} parent=5 // pred_fallthru
        _
    $region6: #{tpu_custom_call.1} parent=1 // loop_footer
      %s26 = sadd.s32 1, %s22
    $region7: #{tpu_custom_call.1} parent=1 // loop_footer_branch
      %21 = sbr.rel target = $region3
    $region8: #{tpu_custom_call.1} parent=1 // loop_exit
      _
    %1055 = vsyncpa [#allocation3], 1
    %s1056 = scalar_lea.sflag [#allocation3], 1
    %1057 = vsyncpa %s1056, 1
    %1058 = vsyncpa [#allocation6], 1
    %s1059 = scalar_lea.sflag [#allocation6], 1
    %1060 = vsyncpa %s1059, 1
    %1061 = vsyncpa [#allocation9], 1
    %1062 = vsyncpa [#allocation4], 1
    %s1063 = scalar_lea.sflag [#allocation4], 1
    %1064 = vsyncpa %s1063, 1

</llo_original>
